<compile_context>
chip_gen: v6e
topology: v6e:2x2x1
jax: 0.10.0
libtpu: 0.0.40
codegen_flags: <defaults>
</compile_context>

<pallas_src>
import jax
import jax.numpy as jnp
from jax.experimental import pallas as pl
from jax.experimental.pallas import tpu as pltpu


_LANES = 128
_GRID = 4          # 2-4 steps is enough for a tensor this small
_ROW_ALIGN = _GRID * 8  # rows per block must stay a multiple of 8


def _relu_kernel(x_ref, o_ref):
    # Elementwise max(x, 0) on the whole VMEM tile (VPU); scalar broadcast.
    o_ref[...] = jnp.maximum(x_ref[...], 0.0)


def relu_pallas(x: jax.Array) -> jax.Array:
    """ReLU over an NCHW tensor, computed in a lane-dense Pallas TPU kernel."""
    orig_shape = x.shape
    flat = x.reshape(-1)
    n = flat.shape[0]

    # Lane-dense slab: rows of 128, row count padded so it splits evenly into
    # _GRID blocks whose row counts are multiples of 8 (full (8,128) tiles).
    rows = pl.cdiv(n, _LANES)
    rows_padded = pl.cdiv(rows, _ROW_ALIGN) * _ROW_ALIGN
    rows_per_block = rows_padded // _GRID
    pad = rows_padded * _LANES - n

    flat_p = jnp.pad(flat, (0, pad)) if pad else flat
    slab = flat_p.reshape(rows_padded, _LANES)

    out_slab = pl.pallas_call(
        _relu_kernel,
        out_shape=jax.ShapeDtypeStruct(slab.shape, slab.dtype),
        grid_spec=pltpu.PrefetchScalarGridSpec(
            num_scalar_prefetch=0,
            grid=(_GRID,),
            in_specs=[pl.BlockSpec((rows_per_block, _LANES), lambda i: (i, 0))],
            out_specs=pl.BlockSpec((rows_per_block, _LANES), lambda i: (i, 0)),
        ),
        compiler_params=pltpu.CompilerParams(
            dimension_semantics=("parallel",),
        ),
        input_output_aliases={0: 0},
    )(slab)

    out_flat = out_slab.reshape(-1)
    if pad:
        out_flat = out_flat[:n]
    return out_flat.reshape(orig_shape)


if __name__ == "__main__":
    key = jax.random.PRNGKey(0)
    # Shape the module's forward implies: [1, 1472, 7, 7] (small, ~288 KiB f32).
    x = jax.random.normal(key, (1, 1472, 7, 7), dtype=jnp.float32)

    y = relu_pallas(x)
    jax.block_until_ready(y)

    # Correctness check against plain JAX reference (ReLU is exact).
    ref = jnp.maximum(x, 0.0)
    assert y.shape == x.shape and y.dtype == x.dtype
    assert bool(jnp.all(y == ref))

    print("KERNEL_OK")
</pallas_src>

<mosaic_0001>
module attributes {stable_mosaic.version = 11 : i64} {
  func.func @_relu_kernel(%arg0: i32, %arg1: memref<144x128xf32, #tpu.memory_space<vmem>>, %arg2: memref<144x128xf32, #tpu.memory_space<vmem>>) attributes {dimension_semantics = [#tpu.dimension_semantics<parallel>], iteration_bounds = array<i64: 4>, scalar_prefetch = 0 : i64, scratch_operands = 0 : i64, tpu.core_type = #tpu.core_type<tc>, window_params = [{transform_indices = @transform_0, window_bounds = array<i64: 144, 128>}, {transform_indices = @transform_1, window_bounds = array<i64: 144, 128>}]} {
    %c0 = arith.constant 0 : index
    %c0_0 = arith.constant 0 : index
    %0 = vector.load %arg1[%c0, %c0_0] : memref<144x128xf32, #tpu.memory_space<vmem>>, vector<144x128xf32>
    %cst = arith.constant 0.000000e+00 : f32
    %1 = vector.broadcast %cst : f32 to vector<144x128xf32>
    %2 = arith.maximumf %0, %1 : vector<144x128xf32>
    %c0_1 = arith.constant 0 : index
    %c0_2 = arith.constant 0 : index
    %3 = vector.load %arg2[%c0_1, %c0_2] : memref<144x128xf32, #tpu.memory_space<vmem>>, vector<144x128xf32>
    tpu.vector_store %arg2[%c0_1, %c0_2], %2 {strides = array<i32>} : memref<144x128xf32, #tpu.memory_space<vmem>>, vector<144x128xf32>,
    return
  }
  func.func @transform_0(%arg0: i32) -> (i32, i32) {
    %c0_i32 = arith.constant 0 : i32
    %c0_i32_0 = arith.constant 0 : i32
    return %arg0, %c0_i32 : i32, i32
  }
  func.func @transform_1(%arg0: i32) -> (i32, i32) {
    %c0_i32 = arith.constant 0 : i32
    %c0_i32_0 = arith.constant 0 : i32
    return %arg0, %c0_i32 : i32, i32
  }
}

</mosaic_0001>

<llo_original>
// kernel: tpu_custom_call.1
$region0: #{tpu_custom_call.1}
  #allocation0 [shape = 'u32[]', space=smem, size = 0x4, offset = 0x4, fixed_abs, tag = 'smem constant byte address 0x4 - core index']
  #allocation1 [shape = 'u32[144,128]{1,0:T(1,128)}', space=vmem, size = 0x12000, scoped, tag = 'internal scratch']
  %s0 = inlined_call_operand.hbm [shape: f32[576,128], index: 0, kind: input, shape index: {}, may-alias: {0,1}]
  %s1 = inlined_call_operand.hbm [shape: f32[576,128], index: 1, kind: output, shape index: {}, may-alias: {0,1}]
  %s2 = sld [smem:[#allocation0]]
  $region41: #{tpu_custom_call.1} parent=0
    _
  %s4 = ssub.s32 1, %s2
  %s5 = scalar_select 0, %s4, %s2
  $region1: #{tpu_custom_call.1} parent=0
    #allocation2 [shape = 'u8[147456]{0}', space=vmem, size = 0x24000, scoped, tag = 'input window, operand 0']
    #allocation3 [shape = 's32[2]{0}', space=sflag, size = 0x8, scoped, tag = 'scoped memory for tpu_custom_call.1']
    #allocation4 [shape = 's32[2]{0}', space=sflag, size = 0x8, scoped, tag = 'scoped memory for tpu_custom_call.1']
    #allocation5 [shape = 'u8[147456]{0}', space=vmem, size = 0x24000, scoped, tag = 'output window, operand 0']
    %6 = vsyncpa [#allocation3], 0
    %s7 = scalar_lea.sflag [#allocation3], 1
    %8 = vsyncpa %s7, 0
    %9 = vsyncpa [#allocation4], 0
    %s10 = scalar_lea.sflag [#allocation4], 1
    %11 = vsyncpa %s10, 0
    loop: start=0, step=1, limit=6
    $region2: #{tpu_custom_call.1} parent=1 // loop_pre_header
      _
    $region3: #{tpu_custom_call.1} parent=1 // loop_header
      %s13 = sphi 0, %s17
      %p14 = scmp.ge.s32.totalorder %s13, 6
      %s23 = sphi 0, %s25
      %s26 = sphi 0, %s23
      %s27 = sphi 0, %s26
      %s43 = sphi 0, %s27
      %s49 = sphi 0, %s51
      %s52 = sphi 0, %s49
      %s53 = sphi 0, %s52
      %s69 = sphi 0, %s53
    $region4: #{tpu_custom_call.1} parent=1 // loop_header_branch
      %16 = sbr.rel (%p14) target = $region8
    $region5: #{tpu_custom_call.1} parent=1 // loop_body
      %s18 = ssub.s32 %s13, 1
      %s19 = ssub.s32 %s13, 2
      %s20 = sadd.s32 %s13, 1
      %s21 = ssub.s32 %s13, %s20
      %p22 = scmp.eq.s32.totalorder %s21, 0
      %s24 = sadd.s32 %s23, 1
      %s25 = scalar_select %p22, %s23, %s24
      %p28 = pneg %p22
      %p29 = scmp.eq.s32.totalorder %s13, 3
      %p30 = por %p28, %p29
      %p31 = scmp.ne.s32.totalorder %s23, %s26
      %p32 = scmp.eq.s32.totalorder %s13, 0
      %p33 = por %p31, %p32
      %p34 = scmp.ne.s32.totalorder %s23, %s26
      %p35 = scmp.eq.s32.totalorder %s18, 3
      %p36 = por %p34, %p35
      %p37 = scmp.ne.s32.totalorder %s26, %s27
      %p38 = scmp.eq.s32.totalorder %s18, 0
      %p39 = por %p37, %p38
      %p40 = scmp.ne.s32.totalorder %s26, %s27
      %p41 = scmp.eq.s32.totalorder %s19, 3
      %p42 = por %p40, %p41
      %p44 = scmp.ne.s32.totalorder %s27, %s43
      %p45 = scmp.eq.s32.totalorder %s19, 0
      %p46 = por %p44, %p45
      %s47 = ssub.s32 %s13, %s20
      %p48 = scmp.eq.s32.totalorder %s47, 0
      %s50 = sadd.s32 %s49, 1
      %s51 = scalar_select %p48, %s49, %s50
      %p54 = pneg %p48
      %p55 = scmp.eq.s32.totalorder %s13, 3
      %p56 = por %p54, %p55
      %p57 = scmp.ne.s32.totalorder %s49, %s52
      %p58 = scmp.eq.s32.totalorder %s13, 0
      %p59 = por %p57, %p58
      %p60 = scmp.ne.s32.totalorder %s49, %s52
      %p61 = scmp.eq.s32.totalorder %s18, 3
      %p62 = por %p60, %p61
      %p63 = scmp.ne.s32.totalorder %s52, %s53
      %p64 = scmp.eq.s32.totalorder %s18, 0
      %p65 = por %p63, %p64
      %p66 = scmp.ne.s32.totalorder %s52, %s53
      %p67 = scmp.eq.s32.totalorder %s19, 3
      %p68 = por %p66, %p67
      %p70 = scmp.ne.s32.totalorder %s53, %s69
      %p71 = scmp.eq.s32.totalorder %s19, 0
      %p72 = por %p70, %p71
      %p73 = scmp.le.s32.totalorder 1, %s13
      %p74 = scmp.lt.s32.totalorder %s13, 5
      %p75 = pnand %p73, %p74
      %p76 = pneg %p75
      // Predicated region
      $region9: #{tpu_custom_call.1} parent=5 // pred_check
        _
      $region10: #{tpu_custom_call.1} parent=5 // pred_check_branch
        %78 = sbr.rel (%p75) target = $region12
      $region11: #{tpu_custom_call.1} parent=5 // pred_region
        %s79 = ssub.s32 %s13, 1
      $region12: #{tpu_custom_call.1} parent=5 // pred_fallthru
        _
      %p80 = scmp.lt.s32.totalorder %s13, 4
      // Predicated region
      $region13: #{tpu_custom_call.1} parent=5 // pred_check
        %p81 = pneg %p80
      $region14: #{tpu_custom_call.1} parent=5 // pred_check_branch
        %83 = sbr.rel (%p81) target = $region16
      $region15: #{tpu_custom_call.1} parent=5 // pred_region
        // Predicated region
        $region17: #{tpu_custom_call.1} parent=15 // pred_check
          %p84 = pneg %p33
        $region18: #{tpu_custom_call.1} parent=15 // pred_check_branch
          %86 = sbr.rel (%p84) target = $region20
        $region19: #{tpu_custom_call.1} parent=15 // pred_region
          %s87 = sand.u32 %s23, 1
          %s88 = scalar_lea.sflag [#allocation3], %s87
          %s89 = sand.u32 %s23, 1
          %s90 = smul.addr %s89, 144
          %s91 = scalar_lea.vmem [#allocation2], %s90
          %s92 = smul.u32 18, %s13
          %s94 = ssub.s32 2304, 2304
          %95 = vsyncadd %s88, %s94
          %s96 = smul.addr %s92, 128
          %s97 = scalar_lea.hbm %s0, %s96
          %s98 = sshll.u32 %s91, 4
          %s99 = int_to_ptr.vmem [resolvable:$true] %s98
          %104 = dma.hbm_to_vmem [thread:$0]  %s97, 2304, %s99, %s88, 128, 128, 8
        $region20: #{tpu_custom_call.1} parent=15 // pred_fallthru
          _
      $region16: #{tpu_custom_call.1} parent=5 // pred_fallthru
        _
      %p105 = scmp.le.s32.totalorder 1, %s13
      %p106 = scmp.lt.s32.totalorder %s13, 5
      %p107 = pnand %p105, %p106
      %p108 = pneg %p107
      // Predicated region
      $region21: #{tpu_custom_call.1} parent=5 // pred_check
        _
      $region22: #{tpu_custom_call.1} parent=5 // pred_check_branch
        %110 = sbr.rel (%p107) target = $region24
      $region23: #{tpu_custom_call.1} parent=5 // pred_region
        %s111 = ssub.s32 %s13, 1
        %s112 = sand.u32 %s26, 1
        %s113 = scalar_lea.sflag [#allocation3], %s112
        %s114 = sand.u32 %s26, 1
        %s115 = smul.addr %s114, 144
        %s116 = scalar_lea.vmem [#allocation2], %s115
        // Predicated region
        $region25: #{tpu_custom_call.1} parent=23 // pred_check
          %p117 = pneg %p39
        $region26: #{tpu_custom_call.1} parent=23 // pred_check_branch
          %119 = sbr.rel (%p117) target = $region28
        $region27: #{tpu_custom_call.1} parent=23 // pred_region
          %120 = dma.done %s113, 2304
        $region28: #{tpu_custom_call.1} parent=23 // pred_fallthru
          _
        %s121 = sand.u32 %s26, 1
        %s122 = scalar_lea.sflag [#allocation3], %s121
        %s123 = sand.u32 %s26, 1
        %s124 = smul.addr %s123, 144
        %s125 = scalar_lea.vmem [#allocation2], %s124
        %p126 = pneg %p39
        %p127 = pneg %p36
        %p128 = pneg %p65
        %p129 = pneg %p62
        %s130 = sand.u32 %s52, 1
        %s131 = scalar_lea.sflag [#allocation4], %s130
        %s132 = sand.u32 %s52, 1
        %s133 = smul.addr %s132, 144
        %s134 = scalar_lea.vmem [#allocation5], %s133
        %s135 = smul.u32 18, %s18
        %s136 = smul.u32 18, %s18
        %v137 = vld [vmem:[%s116] sm:$0xff]
        %v138 = vld [vmem:[%s116 + $0x8] sm:$0xff]
        %v139 = vld [vmem:[%s116 + $0x10] sm:$0xff]
        %v140 = vld [vmem:[%s116 + $0x18] sm:$0xff]
        %v141 = vld [vmem:[%s116 + $0x20] sm:$0xff]
        %v142 = vld [vmem:[%s116 + $0x28] sm:$0xff]
        %v143 = vld [vmem:[%s116 + $0x30] sm:$0xff]
        %v144 = vld [vmem:[%s116 + $0x38] sm:$0xff]
        %v145 = vld [vmem:[%s116 + $0x40] sm:$0xff]
        %v146 = vld [vmem:[%s116 + $0x48] sm:$0xff]
        %v147 = vld [vmem:[%s116 + $0x50] sm:$0xff]
        %v148 = vld [vmem:[%s116 + $0x58] sm:$0xff]
        %v149 = vld [vmem:[%s116 + $0x60] sm:$0xff]
        %v150 = vld [vmem:[%s116 + $0x68] sm:$0xff]
        %v151 = vld [vmem:[%s116 + $0x70] sm:$0xff]
        %v152 = vld [vmem:[%s116 + $0x78] sm:$0xff]
        %v153 = vld [vmem:[%s116 + $0x80] sm:$0xff]
        %v154 = vld [vmem:[%s116 + $0x88] sm:$0xff]
        %v155 = vmax.f32 %v137, 0.0
        %v156 = vmax.f32 %v138, 0.0
        %v157 = vmax.f32 %v139, 0.0
        %v158 = vmax.f32 %v140, 0.0
        %v159 = vmax.f32 %v141, 0.0
        %v160 = vmax.f32 %v142, 0.0
        %v161 = vmax.f32 %v143, 0.0
        %v162 = vmax.f32 %v144, 0.0
        %v163 = vmax.f32 %v145, 0.0
        %v164 = vmax.f32 %v146, 0.0
        %v165 = vmax.f32 %v147, 0.0
        %v166 = vmax.f32 %v148, 0.0
        %v167 = vmax.f32 %v149, 0.0
        %v168 = vmax.f32 %v150, 0.0
        %v169 = vmax.f32 %v151, 0.0
        %v170 = vmax.f32 %v152, 0.0
        %v171 = vmax.f32 %v153, 0.0
        %v172 = vmax.f32 %v154, 0.0
        %173 = vst [vmem:[%s134] sm:$0xff] %v155
        %174 = vst [vmem:[%s134 + $0x8] sm:$0xff] %v156
        %175 = vst [vmem:[%s134 + $0x10] sm:$0xff] %v157
        %176 = vst [vmem:[%s134 + $0x18] sm:$0xff] %v158
        %177 = vst [vmem:[%s134 + $0x20] sm:$0xff] %v159
        %178 = vst [vmem:[%s134 + $0x28] sm:$0xff] %v160
        %179 = vst [vmem:[%s134 + $0x30] sm:$0xff] %v161
        %180 = vst [vmem:[%s134 + $0x38] sm:$0xff] %v162
        %181 = vst [vmem:[%s134 + $0x40] sm:$0xff] %v163
        %182 = vst [vmem:[%s134 + $0x48] sm:$0xff] %v164
        %183 = vst [vmem:[%s134 + $0x50] sm:$0xff] %v165
        %184 = vst [vmem:[%s134 + $0x58] sm:$0xff] %v166
        %185 = vst [vmem:[%s134 + $0x60] sm:$0xff] %v167
        %186 = vst [vmem:[%s134 + $0x68] sm:$0xff] %v168
        %187 = vst [vmem:[%s134 + $0x70] sm:$0xff] %v169
        %188 = vst [vmem:[%s134 + $0x78] sm:$0xff] %v170
        %189 = vst [vmem:[%s134 + $0x80] sm:$0xff] %v171
        %190 = vst [vmem:[%s134 + $0x88] sm:$0xff] %v172
        %s191 = sand.u32 %s52, 1
        %s192 = scalar_lea.sflag [#allocation4], %s191
        %s193 = sand.u32 %s52, 1
        %s194 = smul.addr %s193, 144
        %s195 = scalar_lea.vmem [#allocation5], %s194
        // Predicated region
        $region29: #{tpu_custom_call.1} parent=23 // pred_check
          %p196 = pneg %p62
        $region30: #{tpu_custom_call.1} parent=23 // pred_check_branch
          %198 = sbr.rel (%p196) target = $region32
        $region31: #{tpu_custom_call.1} parent=23 // pred_region
          %s199 = smul.u32 18, %s18
          %s201 = ssub.s32 2304, 2304
          %202 = vsyncadd %s192, %s201
          %s203 = smul.addr %s199, 128
          %s204 = scalar_lea.hbm %s1, %s203
          %s205 = sshll.u32 %s195, 4
          %s206 = int_to_ptr.vmem [resolvable:$true] %s205
          %211 = dma.vmem_to_hbm [thread:$0]  %s206, 2304, %s204, %s192, 128, 128, 8
        $region32: #{tpu_custom_call.1} parent=23 // pred_fallthru
          _
      $region24: #{tpu_custom_call.1} parent=5 // pred_fallthru
        _
      %p212 = scmp.le.s32.totalorder 2, %s13
      // Predicated region
      $region33: #{tpu_custom_call.1} parent=5 // pred_check
        %p213 = pneg %p212
      $region34: #{tpu_custom_call.1} parent=5 // pred_check_branch
        %215 = sbr.rel (%p213) target = $region36
      $region35: #{tpu_custom_call.1} parent=5 // pred_region
        %s216 = ssub.s32 %s13, 2
        // Predicated region
        $region37: #{tpu_custom_call.1} parent=35 // pred_check
          %p217 = pneg %p68
        $region38: #{tpu_custom_call.1} parent=35 // pred_check_branch
          %219 = sbr.rel (%p217) target = $region40
        $region39: #{tpu_custom_call.1} parent=35 // pred_region
          %s220 = sand.u32 %s53, 1
          %s221 = scalar_lea.sflag [#allocation4], %s220
          %s222 = sand.u32 %s53, 1
          %s223 = smul.addr %s222, 144
          %s224 = scalar_lea.vmem [#allocation5], %s223
          %225 = dma.done %s221, 2304
        $region40: #{tpu_custom_call.1} parent=35 // pred_fallthru
          _
      $region36: #{tpu_custom_call.1} parent=5 // pred_fallthru
        _
    $region6: #{tpu_custom_call.1} parent=1 // loop_footer
      %s17 = sadd.s32 1, %s13
    $region7: #{tpu_custom_call.1} parent=1 // loop_footer_branch
      %12 = sbr.rel target = $region3
    $region8: #{tpu_custom_call.1} parent=1 // loop_exit
      _
    %226 = vsyncpa [#allocation3], 1
    %s227 = scalar_lea.sflag [#allocation3], 1
    %228 = vsyncpa %s227, 1
    %229 = vsyncpa [#allocation4], 1
    %s230 = scalar_lea.sflag [#allocation4], 1
    %231 = vsyncpa %s230, 1

</llo_original>
